<compile_context>
chip_gen: v6e
topology: v6e:2x2x1
jax: 0.10.0
libtpu: 0.0.40
codegen_flags: <defaults>
</compile_context>

<pallas_src>
import math

import jax
import jax.numpy as jnp
from jax.experimental import pallas as pl
from jax.experimental.pallas import tpu as pltpu


def pe_add_kernel(x_ref, pe_ref, o_ref):
    # x_ref / o_ref: (bb, ts, d_model)   current batch block x seq tile
    # pe_ref:        (ts, d_model)       positional-encoding tile (shared
    #                                    across the batch dim via broadcast)
    o_ref[...] = x_ref[...] + pe_ref[...].astype(x_ref.dtype)


def make_pe_table(max_len, d_model, dtype=jnp.float32):
    """Exactly mirrors the PyTorch buffer construction (cast once at init)."""
    position = jnp.arange(max_len, dtype=jnp.float32)[:, None]          # (L, 1)
    div_term = jnp.exp(
        jnp.arange(0, d_model, 2, dtype=jnp.float32)
        * -(math.log(10000.0) / d_model))                               # (d/2,)
    angles = position * div_term                                        # (L, d/2)
    pe = jnp.zeros((max_len, d_model), jnp.float32)
    pe = pe.at[:, 0::2].set(jnp.sin(angles))
    pe = pe.at[:, 1::2].set(jnp.cos(angles))
    return pe.astype(dtype)


def _vmem_budget_bytes():
    """Tile-sizing + vmem_limit budget: 25% headroom, capped at 48 MiB."""
    try:
        cap = pltpu.get_tpu_info().vmem_capacity_bytes
    except Exception:
        cap = 64 * 2**20        # conservative: v7x per-TensorCore capacity
    return min(48 * 2**20, int(cap * 0.75))


def _largest_divisor_leq(n, cap):
    for d in range(max(1, min(n, cap)), 0, -1):
        if n % d == 0:
            return d
    return 1


def _choose_seq_tile(seq, align, ts_max):
    """Largest sublane-aligned tile that divides seq, fits ts_max, and leaves
    >= 2 tiles when seq allows (so v7x can shard the seq axis across cores)."""
    ts_max = max(align, (ts_max // align) * align)
    if seq <= align:
        return align                                   # one (padded) tile
    divisors = [t for t in range(align, min(seq, ts_max) + 1, align)
                if seq % t == 0]
    if divisors:
        multi = [t for t in divisors if seq // t >= 2]
        return max(multi) if multi else max(divisors)
    # No aligned divisor fits: fall back to a single aligned tile size
    # (Pallas masks the ragged tail).
    return min(ts_max, pl.cdiv(seq, align) * align)


def positional_encoding(x, pe_table, *, dropout_p=0.0, donate_x=False):
    """x: (batch, seq, d_model). pe_table: (max_len, d_model). Returns x + pe."""
    del dropout_p  # identity in eval / p=0.0 (see TODO at top of file)
    batch, seq, d_model = x.shape
    assert pe_table.shape[0] >= seq and pe_table.shape[1] == d_model

    itemsize = jnp.dtype(x.dtype).itemsize
    sublane = {4: 8, 2: 16, 1: 32}.get(itemsize, 8)    # dtype-aware alignment
    row_bytes = d_model * itemsize

    budget = _vmem_budget_bytes()

    # Live VMEM per seq row of a tile (double-buffered): 2*bb (x in) +
    # 2*bb (out) + 2 (pe) rows.  Pick the largest batch block bb (a divisor
    # of batch) that still allows at least one sublane-aligned seq tile.
    bb_cap = max(1, (budget // (sublane * row_bytes) - 2) // 4)
    bb = _largest_divisor_leq(batch, bb_cap)
    ts_max = max(sublane, budget // ((4 * bb + 2) * row_bytes))
    ts = _choose_seq_tile(seq, sublane, ts_max)

    n_seq_tiles = pl.cdiv(seq, ts)
    n_batch_tiles = batch // bb

    io_alias = {0: 0} if donate_x else {}
    cparams = dict(vmem_limit_bytes=int(budget))

    if n_batch_tiles == 1:
        # Common case: whole batch folded into the block, 1-D grid over seq.
        grid = (n_seq_tiles,)
        x_spec = pl.BlockSpec((batch, ts, d_model), lambda s: (0, s, 0))
        pe_spec = pl.BlockSpec((ts, d_model), lambda s: (s, 0))
        o_spec = pl.BlockSpec((batch, ts, d_model), lambda s: (0, s, 0))
        semantics = ("parallel",)
    else:
        # Fallback for huge batch*d_model: batch innermost so the PE tile's
        # block index is constant across the inner loop (DMA'd once per seq
        # tile and reused).
        grid = (n_seq_tiles, n_batch_tiles)
        x_spec = pl.BlockSpec((bb, ts, d_model), lambda s, b: (b, s, 0))
        pe_spec = pl.BlockSpec((ts, d_model), lambda s, b: (s, 0))
        o_spec = pl.BlockSpec((bb, ts, d_model), lambda s, b: (b, s, 0))
        semantics = ("parallel", "parallel")

    out = pl.pallas_call(
        pe_add_kernel,
        out_shape=jax.ShapeDtypeStruct((batch, seq, d_model), x.dtype),
        grid=grid,
        in_specs=[x_spec, pe_spec],
        out_specs=o_spec,
        input_output_aliases=io_alias,
        compiler_params=pltpu.CompilerParams(
            dimension_semantics=semantics, **cparams),
    )(x, pe_table)
    return out


if __name__ == "__main__":
    # Small but lane-dense shapes consistent with the module.
    batch, seq, d_model = 4, 64, 128
    max_len = 512
    dropout_p = 0.0

    key = jax.random.PRNGKey(0)
    x = jax.random.normal(key, (batch, seq, d_model), dtype=jnp.float32)

    # "Module init": build the PE buffer once, already in the model dtype.
    pe_table = make_pe_table(max_len, d_model, dtype=x.dtype)

    y = positional_encoding(x, pe_table, dropout_p=dropout_p)
    y = jax.block_until_ready(y)

    # Pure-JAX reference check (dropout p=0.0 -> identity).
    ref = x + pe_table[None, :seq, :].astype(x.dtype)
    assert jnp.allclose(y, ref, atol=1e-6, rtol=1e-6), "mismatch vs reference"

    print("KERNEL_OK")
</pallas_src>

<mosaic_0001>
module attributes {stable_mosaic.version = 11 : i64} {
  func.func @pe_add_kernel(%arg0: i32, %arg1: memref<4x32x128xf32, #tpu.memory_space<vmem>>, %arg2: memref<32x128xf32, #tpu.memory_space<vmem>>, %arg3: memref<4x32x128xf32, #tpu.memory_space<vmem>>) attributes {dimension_semantics = [#tpu.dimension_semantics<parallel>], iteration_bounds = array<i64: 2>, scalar_prefetch = 0 : i64, scratch_operands = 0 : i64, tpu.core_type = #tpu.core_type<tc>, window_params = [{transform_indices = @transform_0, window_bounds = array<i64: 4, 32, 128>}, {transform_indices = @transform_1, window_bounds = array<i64: 32, 128>}, {transform_indices = @transform_2, window_bounds = array<i64: 4, 32, 128>}]} {
    %c0 = arith.constant 0 : index
    %c0_0 = arith.constant 0 : index
    %c0_1 = arith.constant 0 : index
    %0 = vector.load %arg1[%c0, %c0_0, %c0_1] : memref<4x32x128xf32, #tpu.memory_space<vmem>>, vector<4x32x128xf32>
    %c0_2 = arith.constant 0 : index
    %c0_3 = arith.constant 0 : index
    %1 = vector.load %arg2[%c0_2, %c0_3] : memref<32x128xf32, #tpu.memory_space<vmem>>, vector<32x128xf32>
    %2 = vector.shape_cast %1 : vector<32x128xf32> to vector<1x32x128xf32>
    %3 = vector.broadcast %2 : vector<1x32x128xf32> to vector<4x32x128xf32>
    %4 = arith.addf %0, %3 : vector<4x32x128xf32>
    %c0_4 = arith.constant 0 : index
    %c0_5 = arith.constant 0 : index
    %c0_6 = arith.constant 0 : index
    %5 = vector.load %arg3[%c0_4, %c0_5, %c0_6] : memref<4x32x128xf32, #tpu.memory_space<vmem>>, vector<4x32x128xf32>
    tpu.vector_store %arg3[%c0_4, %c0_5, %c0_6], %4 {strides = array<i32>} : memref<4x32x128xf32, #tpu.memory_space<vmem>>, vector<4x32x128xf32>,
    return
  }
  func.func @transform_0(%arg0: i32) -> (i32, i32, i32) {
    %c0_i32 = arith.constant 0 : i32
    %c0_i32_0 = arith.constant 0 : i32
    %c0_i32_1 = arith.constant 0 : i32
    return %c0_i32, %arg0, %c0_i32_0 : i32, i32, i32
  }
  func.func @transform_1(%arg0: i32) -> (i32, i32) {
    %c0_i32 = arith.constant 0 : i32
    %c0_i32_0 = arith.constant 0 : i32
    return %arg0, %c0_i32 : i32, i32
  }
  func.func @transform_2(%arg0: i32) -> (i32, i32, i32) {
    %c0_i32 = arith.constant 0 : i32
    %c0_i32_0 = arith.constant 0 : i32
    %c0_i32_1 = arith.constant 0 : i32
    return %c0_i32, %arg0, %c0_i32_0 : i32, i32, i32
  }
}

</mosaic_0001>

<llo_original>
// kernel: tpu_custom_call.1
$region0: #{tpu_custom_call.1}
  #allocation0 [shape = 'u32[]', space=smem, size = 0x4, offset = 0x4, fixed_abs, tag = 'smem constant byte address 0x4 - core index']
  #allocation1 [shape = 'u32[144,128]{1,0:T(1,128)}', space=vmem, size = 0x12000, scoped, tag = 'internal scratch']
  #allocation8 [shape = 's32[]', space=sflag, size = 0x4, offset = 0, fixed_abs, tag = 'sflag constant byte address 0x0 - dummy sync flag']
  #allocation10 [shape = 's32[]', space=sflag, size = 0x4, offset = 0, fixed_abs, tag = 'sflag constant byte address 0x0 - dummy sync flag']
  %s0 = inlined_call_operand.hbm [shape: f32[4,64,128], index: 0, kind: input, shape index: {}]
  %s1 = inlined_call_operand.hbm [shape: f32[512,128], index: 1, kind: input, shape index: {}]
  %s2 = inlined_call_operand.hbm [shape: f32[4,64,128], index: 2, kind: output, shape index: {}]
  %s3 = sld [smem:[#allocation0]]
  $region49: #{tpu_custom_call.1} parent=0
    _
  %s5 = ssub.s32 1, %s3
  %s6 = scalar_select 0, %s5, %s3
  $region1: #{tpu_custom_call.1} parent=0
    #allocation2 [shape = 'u8[131072]{0}', space=vmem, size = 0x20000, scoped, tag = 'input window, operand 0']
    #allocation3 [shape = 's32[2]{0}', space=sflag, size = 0x8, scoped, tag = 'scoped memory for tpu_custom_call.1']
    #allocation4 [shape = 's32[2]{0}', space=sflag, size = 0x8, scoped, tag = 'scoped memory for tpu_custom_call.1']
    #allocation5 [shape = 'u8[32768]{0}', space=vmem, size = 0x8000, scoped, tag = 'input window, operand 1']
    #allocation6 [shape = 's32[2]{0}', space=sflag, size = 0x8, scoped, tag = 'scoped memory for tpu_custom_call.1']
    #allocation7 [shape = 'u8[131072]{0}', space=vmem, size = 0x20000, scoped, tag = 'output window, operand 0']
    %7 = vsyncpa [#allocation3], 0
    %s8 = scalar_lea.sflag [#allocation3], 1
    %9 = vsyncpa %s8, 0
    %10 = vsyncpa [#allocation6], 0
    %s11 = scalar_lea.sflag [#allocation6], 1
    %12 = vsyncpa %s11, 0
    %13 = vsyncpa [#allocation4], 0
    %s14 = scalar_lea.sflag [#allocation4], 1
    %15 = vsyncpa %s14, 0
    loop: start=0, step=1, limit=4
    $region2: #{tpu_custom_call.1} parent=1 // loop_pre_header
      _
    $region3: #{tpu_custom_call.1} parent=1 // loop_header
      %s17 = sphi 0, %s21
      %p18 = scmp.ge.s32.totalorder %s17, 4
      %s27 = sphi 0, %s29
      %s30 = sphi 0, %s27
      %s31 = sphi 0, %s30
      %s47 = sphi 0, %s31
      %s53 = sphi 0, %s55
      %s56 = sphi 0, %s53
      %s57 = sphi 0, %s56
      %s73 = sphi 0, %s57
      %s79 = sphi 0, %s81
      %s82 = sphi 0, %s79
      %s83 = sphi 0, %s82
      %s99 = sphi 0, %s83
    $region4: #{tpu_custom_call.1} parent=1 // loop_header_branch
      %20 = sbr.rel (%p18) target = $region8
    $region5: #{tpu_custom_call.1} parent=1 // loop_body
      %s22 = ssub.s32 %s17, 1
      %s23 = ssub.s32 %s17, 2
      %s24 = sadd.s32 %s17, 1
      %s25 = ssub.s32 %s17, %s24
      %p26 = scmp.eq.s32.totalorder %s25, 0
      %s28 = sadd.s32 %s27, 1
      %s29 = scalar_select %p26, %s27, %s28
      %p32 = pneg %p26
      %p33 = scmp.eq.s32.totalorder %s17, 1
      %p34 = por %p32, %p33
      %p35 = scmp.ne.s32.totalorder %s27, %s30
      %p36 = scmp.eq.s32.totalorder %s17, 0
      %p37 = por %p35, %p36
      %p38 = scmp.ne.s32.totalorder %s27, %s30
      %p39 = scmp.eq.s32.totalorder %s22, 1
      %p40 = por %p38, %p39
      %p41 = scmp.ne.s32.totalorder %s30, %s31
      %p42 = scmp.eq.s32.totalorder %s22, 0
      %p43 = por %p41, %p42
      %p44 = scmp.ne.s32.totalorder %s30, %s31
      %p45 = scmp.eq.s32.totalorder %s23, 1
      %p46 = por %p44, %p45
      %p48 = scmp.ne.s32.totalorder %s31, %s47
      %p49 = scmp.eq.s32.totalorder %s23, 0
      %p50 = por %p48, %p49
      %s51 = ssub.s32 %s17, %s24
      %p52 = scmp.eq.s32.totalorder %s51, 0
      %s54 = sadd.s32 %s53, 1
      %s55 = scalar_select %p52, %s53, %s54
      %p58 = pneg %p52
      %p59 = scmp.eq.s32.totalorder %s17, 1
      %p60 = por %p58, %p59
      %p61 = scmp.ne.s32.totalorder %s53, %s56
      %p62 = scmp.eq.s32.totalorder %s17, 0
      %p63 = por %p61, %p62
      %p64 = scmp.ne.s32.totalorder %s53, %s56
      %p65 = scmp.eq.s32.totalorder %s22, 1
      %p66 = por %p64, %p65
      %p67 = scmp.ne.s32.totalorder %s56, %s57
      %p68 = scmp.eq.s32.totalorder %s22, 0
      %p69 = por %p67, %p68
      %p70 = scmp.ne.s32.totalorder %s56, %s57
      %p71 = scmp.eq.s32.totalorder %s23, 1
      %p72 = por %p70, %p71
      %p74 = scmp.ne.s32.totalorder %s57, %s73
      %p75 = scmp.eq.s32.totalorder %s23, 0
      %p76 = por %p74, %p75
      %s77 = ssub.s32 %s17, %s24
      %p78 = scmp.eq.s32.totalorder %s77, 0
      %s80 = sadd.s32 %s79, 1
      %s81 = scalar_select %p78, %s79, %s80
      %p84 = pneg %p78
      %p85 = scmp.eq.s32.totalorder %s17, 1
      %p86 = por %p84, %p85
      %p87 = scmp.ne.s32.totalorder %s79, %s82
      %p88 = scmp.eq.s32.totalorder %s17, 0
      %p89 = por %p87, %p88
      %p90 = scmp.ne.s32.totalorder %s79, %s82
      %p91 = scmp.eq.s32.totalorder %s22, 1
      %p92 = por %p90, %p91
      %p93 = scmp.ne.s32.totalorder %s82, %s83
      %p94 = scmp.eq.s32.totalorder %s22, 0
      %p95 = por %p93, %p94
      %p96 = scmp.ne.s32.totalorder %s82, %s83
      %p97 = scmp.eq.s32.totalorder %s23, 1
      %p98 = por %p96, %p97
      %p100 = scmp.ne.s32.totalorder %s83, %s99
      %p101 = scmp.eq.s32.totalorder %s23, 0
      %p102 = por %p100, %p101
      %p103 = scmp.le.s32.totalorder 1, %s17
      %p104 = scmp.lt.s32.totalorder %s17, 3
      %p105 = pnand %p103, %p104
      %p106 = pneg %p105
      // Predicated region
      $region9: #{tpu_custom_call.1} parent=5 // pred_check
        _
      $region10: #{tpu_custom_call.1} parent=5 // pred_check_branch
        %108 = sbr.rel (%p105) target = $region12
      $region11: #{tpu_custom_call.1} parent=5 // pred_region
        %s109 = ssub.s32 %s17, 1
      $region12: #{tpu_custom_call.1} parent=5 // pred_fallthru
        _
      %p110 = scmp.lt.s32.totalorder %s17, 2
      // Predicated region
      $region13: #{tpu_custom_call.1} parent=5 // pred_check
        %p111 = pneg %p110
      $region14: #{tpu_custom_call.1} parent=5 // pred_check_branch
        %113 = sbr.rel (%p111) target = $region16
      $region15: #{tpu_custom_call.1} parent=5 // pred_region
        // Predicated region
        $region17: #{tpu_custom_call.1} parent=15 // pred_check
          %p114 = pneg %p37
        $region18: #{tpu_custom_call.1} parent=15 // pred_check_branch
          %116 = sbr.rel (%p114) target = $region20
        $region19: #{tpu_custom_call.1} parent=15 // pred_region
          #allocation9 [shape = 'u32[6]{0}', space=smem, size = 0x18, scoped, tag = 'DMA stride descriptor']
          %s117 = sand.u32 %s27, 1
          %s118 = scalar_lea.sflag [#allocation3], %s117
          %s119 = sand.u32 %s27, 1
          %s120 = smul.addr %s119, 128
          %s121 = scalar_lea.vmem [#allocation2], %s120
          %s122 = smul.u32 4, %s17
          %s124 = ssub.s32 2048, 2048
          %125 = vsyncadd %s118, %s124
          %s126 = smul.addr %s122, 128
          %s127 = scalar_lea.hbm %s0, %s126
          %s129 = sshll.u32 1, 14
          %s130 = sxor.u32 4294967295, %s129
          %s132 = sld [smem:[#allocation0]]
          %s133 = sadd.s32 2, %s132
          %s135 = sshll.u32 7, 26
          %s136 = sxor.u32 4294967295, %s135
          %s137 = sand.u32 0, %s136
          %s138 = sshll.u32 %s133, 26
          %s139 = sor.u32 %s137, %s138
          %s140 = sshll.u32 %s121, 4
          %s141 = int_to_ptr.vmem [resolvable:$true] %s140
          %147 = sst [smem:[#allocation9]] 1024
          %s148 = scalar_lea.smem [#allocation9], 1
          %149 = sst [smem:[%s148]] 512
          %s150 = scalar_lea.smem [#allocation9], 2
          %151 = sst [smem:[%s150]] 4
          %s152 = scalar_lea.smem [#allocation9], 3
          %153 = sst [smem:[%s152]] 128
          %s154 = scalar_lea.smem [#allocation9], 4
          %155 = sst [smem:[%s154]] 128
          %s156 = scalar_lea.smem [#allocation9], 5
          %157 = sst [smem:[%s156]] 8
          %159 = dma.general %s127, 2048, %s141, %s118, 131072, [#allocation9], %s139, 0
        $region20: #{tpu_custom_call.1} parent=15 // pred_fallthru
          _
        // Predicated region
        $region21: #{tpu_custom_call.1} parent=15 // pred_check
          %p160 = pneg %p63
        $region22: #{tpu_custom_call.1} parent=15 // pred_check_branch
          %162 = sbr.rel (%p160) target = $region24
        $region23: #{tpu_custom_call.1} parent=15 // pred_region
          %s163 = sand.u32 %s53, 1
          %s164 = scalar_lea.sflag [#allocation6], %s163
          %s165 = sand.u32 %s53, 1
          %s166 = smul.addr %s165, 32
          %s167 = scalar_lea.vmem [#allocation5], %s166
          %s168 = smul.u32 4, %s17
          %s170 = ssub.s32 512, 512
          %171 = vsyncadd %s164, %s170
          %s172 = smul.addr %s168, 128
          %s173 = scalar_lea.hbm %s1, %s172
          %s174 = sshll.u32 %s167, 4
          %s175 = int_to_ptr.vmem [resolvable:$true] %s174
          %180 = dma.hbm_to_vmem [thread:$0]  %s173, 512, %s175, %s164, 128, 128, 8
        $region24: #{tpu_custom_call.1} parent=15 // pred_fallthru
          _
      $region16: #{tpu_custom_call.1} parent=5 // pred_fallthru
        _
      %p181 = scmp.le.s32.totalorder 1, %s17
      %p182 = scmp.lt.s32.totalorder %s17, 3
      %p183 = pnand %p181, %p182
      %p184 = pneg %p183
      // Predicated region
      $region25: #{tpu_custom_call.1} parent=5 // pred_check
        _
      $region26: #{tpu_custom_call.1} parent=5 // pred_check_branch
        %186 = sbr.rel (%p183) target = $region28
      $region27: #{tpu_custom_call.1} parent=5 // pred_region
        %s187 = ssub.s32 %s17, 1
        %s188 = sand.u32 %s30, 1
        %s189 = scalar_lea.sflag [#allocation3], %s188
        %s190 = sand.u32 %s30, 1
        %s191 = smul.addr %s190, 128
        %s192 = scalar_lea.vmem [#allocation2], %s191
        // Predicated region
        $region29: #{tpu_custom_call.1} parent=27 // pred_check
          %p193 = pneg %p43
        $region30: #{tpu_custom_call.1} parent=27 // pred_check_branch
          %195 = sbr.rel (%p193) target = $region32
        $region31: #{tpu_custom_call.1} parent=27 // pred_region
          %196 = dma.done %s189, 2048
        $region32: #{tpu_custom_call.1} parent=27 // pred_fallthru
          _
        %s197 = sand.u32 %s56, 1
        %s198 = scalar_lea.sflag [#allocation6], %s197
        %s199 = sand.u32 %s56, 1
        %s200 = smul.addr %s199, 32
        %s201 = scalar_lea.vmem [#allocation5], %s200
        // Predicated region
        $region33: #{tpu_custom_call.1} parent=27 // pred_check
          %p202 = pneg %p69
        $region34: #{tpu_custom_call.1} parent=27 // pred_check_branch
          %204 = sbr.rel (%p202) target = $region36
        $region35: #{tpu_custom_call.1} parent=27 // pred_region
          %205 = dma.done %s198, 512
        $region36: #{tpu_custom_call.1} parent=27 // pred_fallthru
          _
        %s206 = sand.u32 %s30, 1
        %s207 = scalar_lea.sflag [#allocation3], %s206
        %s208 = sand.u32 %s30, 1
        %s209 = smul.addr %s208, 128
        %s210 = scalar_lea.vmem [#allocation2], %s209
        %p211 = pneg %p43
        %p212 = pneg %p40
        %s213 = sand.u32 %s56, 1
        %s214 = scalar_lea.sflag [#allocation6], %s213
        %s215 = sand.u32 %s56, 1
        %s216 = smul.addr %s215, 32
        %s217 = scalar_lea.vmem [#allocation5], %s216
        %p218 = pneg %p69
        %p219 = pneg %p66
        %p220 = pneg %p95
        %p221 = pneg %p92
        %s222 = sand.u32 %s82, 1
        %s223 = scalar_lea.sflag [#allocation4], %s222
        %s224 = sand.u32 %s82, 1
        %s225 = smul.addr %s224, 128
        %s226 = scalar_lea.vmem [#allocation7], %s225
        %s227 = smul.u32 4, %s22
        %s228 = smul.u32 4, %s22
        %s229 = smul.u32 4, %s22
        %v230 = vld [vmem:[%s192] sm:$0xff]
        %v231 = vld [vmem:[%s192 + $0x8] sm:$0xff]
        %v232 = vld [vmem:[%s192 + $0x10] sm:$0xff]
        %v233 = vld [vmem:[%s192 + $0x18] sm:$0xff]
        %v234 = vld [vmem:[%s192 + $0x20] sm:$0xff]
        %v235 = vld [vmem:[%s192 + $0x28] sm:$0xff]
        %v236 = vld [vmem:[%s192 + $0x30] sm:$0xff]
        %v237 = vld [vmem:[%s192 + $0x38] sm:$0xff]
        %v238 = vld [vmem:[%s192 + $0x40] sm:$0xff]
        %v239 = vld [vmem:[%s192 + $0x48] sm:$0xff]
        %v240 = vld [vmem:[%s192 + $0x50] sm:$0xff]
        %v241 = vld [vmem:[%s192 + $0x58] sm:$0xff]
        %v242 = vld [vmem:[%s192 + $0x60] sm:$0xff]
        %v243 = vld [vmem:[%s192 + $0x68] sm:$0xff]
        %v244 = vld [vmem:[%s192 + $0x70] sm:$0xff]
        %v245 = vld [vmem:[%s192 + $0x78] sm:$0xff]
        %v246 = vld [vmem:[%s201] sm:$0xff]
        %v247 = vld [vmem:[%s201 + $0x8] sm:$0xff]
        %v248 = vld [vmem:[%s201 + $0x10] sm:$0xff]
        %v249 = vld [vmem:[%s201 + $0x18] sm:$0xff]
        %v250 = vadd.f32 %v230, %v246
        %v251 = vadd.f32 %v231, %v247
        %v252 = vadd.f32 %v232, %v248
        %v253 = vadd.f32 %v233, %v249
        %v254 = vadd.f32 %v234, %v246
        %v255 = vadd.f32 %v235, %v247
        %v256 = vadd.f32 %v236, %v248
        %v257 = vadd.f32 %v237, %v249
        %v258 = vadd.f32 %v238, %v246
        %v259 = vadd.f32 %v239, %v247
        %v260 = vadd.f32 %v240, %v248
        %v261 = vadd.f32 %v241, %v249
        %v262 = vadd.f32 %v242, %v246
        %v263 = vadd.f32 %v243, %v247
        %v264 = vadd.f32 %v244, %v248
        %v265 = vadd.f32 %v245, %v249
        %266 = vst [vmem:[%s226] sm:$0xff] %v250
        %267 = vst [vmem:[%s226 + $0x8] sm:$0xff] %v251
        %268 = vst [vmem:[%s226 + $0x10] sm:$0xff] %v252
        %269 = vst [vmem:[%s226 + $0x18] sm:$0xff] %v253
        %270 = vst [vmem:[%s226 + $0x20] sm:$0xff] %v254
        %271 = vst [vmem:[%s226 + $0x28] sm:$0xff] %v255
        %272 = vst [vmem:[%s226 + $0x30] sm:$0xff] %v256
        %273 = vst [vmem:[%s226 + $0x38] sm:$0xff] %v257
        %274 = vst [vmem:[%s226 + $0x40] sm:$0xff] %v258
        %275 = vst [vmem:[%s226 + $0x48] sm:$0xff] %v259
        %276 = vst [vmem:[%s226 + $0x50] sm:$0xff] %v260
        %277 = vst [vmem:[%s226 + $0x58] sm:$0xff] %v261
        %278 = vst [vmem:[%s226 + $0x60] sm:$0xff] %v262
        %279 = vst [vmem:[%s226 + $0x68] sm:$0xff] %v263
        %280 = vst [vmem:[%s226 + $0x70] sm:$0xff] %v264
        %281 = vst [vmem:[%s226 + $0x78] sm:$0xff] %v265
        %s282 = sand.u32 %s82, 1
        %s283 = scalar_lea.sflag [#allocation4], %s282
        %s284 = sand.u32 %s82, 1
        %s285 = smul.addr %s284, 128
        %s286 = scalar_lea.vmem [#allocation7], %s285
        // Predicated region
        $region37: #{tpu_custom_call.1} parent=27 // pred_check
          %p287 = pneg %p92
        $region38: #{tpu_custom_call.1} parent=27 // pred_check_branch
          %289 = sbr.rel (%p287) target = $region40
        $region39: #{tpu_custom_call.1} parent=27 // pred_region
          #allocation11 [shape = 'u32[6]{0}', space=smem, size = 0x18, scoped, tag = 'DMA stride descriptor']
          %s290 = smul.u32 4, %s22
          %s292 = ssub.s32 2048, 2048
          %293 = vsyncadd %s283, %s292
          %s294 = smul.addr %s290, 128
          %s295 = scalar_lea.hbm %s2, %s294
          %s297 = sshll.u32 1, 14
          %s298 = sxor.u32 4294967295, %s297
          %s301 = sshll.u32 7, 18
          %s302 = sxor.u32 4294967295, %s301
          %s303 = sand.u32 0, %s302
          %s305 = sor.u32 %s303, 0
          %s306 = sshll.u32 %s286, 4
          %s307 = int_to_ptr.vmem [resolvable:$true] %s306
          %313 = sst [smem:[#allocation11]] 512
          %s314 = scalar_lea.smem [#allocation11], 1
          %315 = sst [smem:[%s314]] 1024
          %s316 = scalar_lea.smem [#allocation11], 2
          %317 = sst [smem:[%s316]] 4
          %s318 = scalar_lea.smem [#allocation11], 3
          %319 = sst [smem:[%s318]] 128
          %s320 = scalar_lea.smem [#allocation11], 4
          %321 = sst [smem:[%s320]] 128
          %s322 = scalar_lea.smem [#allocation11], 5
          %323 = sst [smem:[%s322]] 8
          %325 = dma.general %s307, 2048, %s295, %s283, 131072, [#allocation11], %s305, 0
        $region40: #{tpu_custom_call.1} parent=27 // pred_fallthru
          _
      $region28: #{tpu_custom_call.1} parent=5 // pred_fallthru
        _
      %p326 = scmp.le.s32.totalorder 2, %s17
      // Predicated region
      $region41: #{tpu_custom_call.1} parent=5 // pred_check
        %p327 = pneg %p326
      $region42: #{tpu_custom_call.1} parent=5 // pred_check_branch
        %329 = sbr.rel (%p327) target = $region44
      $region43: #{tpu_custom_call.1} parent=5 // pred_region
        %s330 = ssub.s32 %s17, 2
        // Predicated region
        $region45: #{tpu_custom_call.1} parent=43 // pred_check
          %p331 = pneg %p98
        $region46: #{tpu_custom_call.1} parent=43 // pred_check_branch
          %333 = sbr.rel (%p331) target = $region48
        $region47: #{tpu_custom_call.1} parent=43 // pred_region
          %s334 = sand.u32 %s83, 1
          %s335 = scalar_lea.sflag [#allocation4], %s334
          %s336 = sand.u32 %s83, 1
          %s337 = smul.addr %s336, 128
          %s338 = scalar_lea.vmem [#allocation7], %s337
          %339 = dma.done %s335, 2048
        $region48: #{tpu_custom_call.1} parent=43 // pred_fallthru
          _
      $region44: #{tpu_custom_call.1} parent=5 // pred_fallthru
        _
    $region6: #{tpu_custom_call.1} parent=1 // loop_footer
      %s21 = sadd.s32 1, %s17
    $region7: #{tpu_custom_call.1} parent=1 // loop_footer_branch
      %16 = sbr.rel target = $region3
    $region8: #{tpu_custom_call.1} parent=1 // loop_exit
      _
    %340 = vsyncpa [#allocation3], 1
    %s341 = scalar_lea.sflag [#allocation3], 1
    %342 = vsyncpa %s341, 1
    %343 = vsyncpa [#allocation6], 1
    %s344 = scalar_lea.sflag [#allocation6], 1
    %345 = vsyncpa %s344, 1
    %346 = vsyncpa [#allocation4], 1
    %s347 = scalar_lea.sflag [#allocation4], 1
    %348 = vsyncpa %s347, 1

</llo_original>
